<compile_context>
chip_gen: v6e
topology: v6e:2x2x1
jax: 0.10.0
libtpu: 0.0.40
codegen_flags: <defaults>
</compile_context>

<pallas_src>
import jax
import jax.numpy as jnp
from jax.experimental import pallas as pl
from jax.experimental.pallas import tpu as pltpu

IN_FEATURES = 3
OUT_FEATURES = 5


def _linear_kernel(x_ref, wb_ref, o_ref):
    # x: (B, C_in) f32
    # wb: (C_in + 1, C_out) f32  -- rows [0:C_in] = W^T, row [C_in] = bias
    x = x_ref[...]
    w = wb_ref[:IN_FEATURES, :]                       # static view -> (C_in, C_out)
    b = wb_ref[IN_FEATURES:IN_FEATURES + 1, :]        # static view -> (1, C_out)

    # Unrolled VPU FMA over the tiny K=3 contraction (no MXU involvement).
    y = b
    for k in range(IN_FEATURES):
        y = y + x[:, k:k + 1] * w[k:k + 1, :]
    o_ref[...] = y.astype(o_ref.dtype)


@jax.jit
def linear_forward(x, wb):
    """y = x @ W^T + b, with W^T and b fused row-wise into wb."""
    B, C_in = x.shape
    C_out = wb.shape[1]
    flops = 2 * B * C_in * C_out
    bytes_accessed = 4 * (x.size + wb.size + B * C_out)

    return pl.pallas_call(
        _linear_kernel,
        out_shape=jax.ShapeDtypeStruct((B, C_out), jnp.float32),
        # Tiny shapes: every operand is a single full-array VMEM block.
        in_specs=[pl.BlockSpec(memory_space=pltpu.MemorySpace.VMEM)] * 2,
        out_specs=pl.BlockSpec(memory_space=pltpu.MemorySpace.VMEM),
        cost_estimate=pl.CostEstimate(
            flops=flops, transcendentals=0, bytes_accessed=bytes_accessed),
    )(x, wb)


def init_params(key, in_features=IN_FEATURES, out_features=OUT_FEATURES):
    """Deterministic init mimicking nn.Linear (uniform +-1/sqrt(fan_in)).

    Returns a single fused parameter array of shape (in_features + 1,
    out_features): rows [0:in_features] hold W^T, the last row holds the bias.
    """
    kw, kb = jax.random.split(key)
    bound = 1.0 / jnp.sqrt(jnp.float32(in_features))
    w_t = jax.random.uniform(kw, (in_features, out_features), jnp.float32,
                             -bound, bound)
    b = jax.random.uniform(kb, (1, out_features), jnp.float32, -bound, bound)
    wb = jnp.concatenate([w_t, b], axis=0)            # (in+1, out), done once
    return wb


if __name__ == "__main__":
    key = jax.random.PRNGKey(0)
    k_x, k_par = jax.random.split(key)

    batch = 2
    x = jax.random.normal(k_x, (batch, IN_FEATURES), jnp.float32)
    wb = init_params(k_par)

    out = linear_forward(x, wb)
    jax.block_until_ready(out)

    assert out.shape == (batch, OUT_FEATURES)
    # Reference check against plain XLA.
    ref = x @ wb[:IN_FEATURES, :] + wb[IN_FEATURES:, :]
    assert jnp.allclose(out, ref, atol=1e-5, rtol=1e-5)

    print("KERNEL_OK")
</pallas_src>

<mosaic_0001>
module attributes {stable_mosaic.version = 11 : i64} {
  func.func @_linear_kernel(%arg0: memref<2x3xf32, #tpu.memory_space<vmem>>, %arg1: memref<4x5xf32, #tpu.memory_space<vmem>>, %arg2: memref<2x5xf32, #tpu.memory_space<vmem>>) attributes {dimension_semantics = [], scalar_prefetch = 0 : i64, scratch_operands = 0 : i64, tpu.core_type = #tpu.core_type<tc>} {
    %c0 = arith.constant 0 : index
    %c0_0 = arith.constant 0 : index
    %0 = vector.load %arg0[%c0, %c0_0] : memref<2x3xf32, #tpu.memory_space<vmem>>, vector<2x3xf32>
    %c0_1 = arith.constant 0 : index
    %c0_2 = arith.constant 0 : index
    %1 = vector.load %arg1[%c0_1, %c0_2] : memref<4x5xf32, #tpu.memory_space<vmem>>, vector<3x5xf32>
    %c3 = arith.constant 3 : index
    %c0_3 = arith.constant 0 : index
    %2 = vector.load %arg1[%c3, %c0_3] : memref<4x5xf32, #tpu.memory_space<vmem>>, vector<1x5xf32>
    %3 = vector.extract_strided_slice %0 {offsets = [0, 0], sizes = [2, 1], strides = [1, 1]} : vector<2x3xf32> to vector<2x1xf32>
    %4 = vector.extract_strided_slice %1 {offsets = [0, 0], sizes = [1, 5], strides = [1, 1]} : vector<3x5xf32> to vector<1x5xf32>
    %5 = vector.broadcast %3 : vector<2x1xf32> to vector<2x5xf32>
    %6 = vector.broadcast %4 : vector<1x5xf32> to vector<2x5xf32>
    %7 = arith.mulf %5, %6 : vector<2x5xf32>
    %8 = vector.broadcast %2 : vector<1x5xf32> to vector<2x5xf32>
    %9 = arith.addf %8, %7 : vector<2x5xf32>
    %10 = vector.extract_strided_slice %0 {offsets = [0, 1], sizes = [2, 1], strides = [1, 1]} : vector<2x3xf32> to vector<2x1xf32>
    %11 = vector.extract_strided_slice %1 {offsets = [1, 0], sizes = [1, 5], strides = [1, 1]} : vector<3x5xf32> to vector<1x5xf32>
    %12 = vector.broadcast %10 : vector<2x1xf32> to vector<2x5xf32>
    %13 = vector.broadcast %11 : vector<1x5xf32> to vector<2x5xf32>
    %14 = arith.mulf %12, %13 : vector<2x5xf32>
    %15 = arith.addf %9, %14 : vector<2x5xf32>
    %16 = vector.extract_strided_slice %0 {offsets = [0, 2], sizes = [2, 1], strides = [1, 1]} : vector<2x3xf32> to vector<2x1xf32>
    %17 = vector.extract_strided_slice %1 {offsets = [2, 0], sizes = [1, 5], strides = [1, 1]} : vector<3x5xf32> to vector<1x5xf32>
    %18 = vector.broadcast %16 : vector<2x1xf32> to vector<2x5xf32>
    %19 = vector.broadcast %17 : vector<1x5xf32> to vector<2x5xf32>
    %20 = arith.mulf %18, %19 : vector<2x5xf32>
    %21 = arith.addf %15, %20 : vector<2x5xf32>
    %c0_4 = arith.constant 0 : index
    %c0_5 = arith.constant 0 : index
    %22 = vector.load %arg2[%c0_4, %c0_5] : memref<2x5xf32, #tpu.memory_space<vmem>>, vector<2x5xf32>
    tpu.vector_store %arg2[%c0_4, %c0_5], %21 {strides = array<i32>} : memref<2x5xf32, #tpu.memory_space<vmem>>, vector<2x5xf32>,
    return
  }
}

</mosaic_0001>

<llo_original>
// kernel: linear_forward.1
$region0: #{linear_forward.1}
  #allocation0 [shape = 'u32[]', space=smem, size = 0x4, offset = 0x4, fixed_abs, tag = 'smem constant byte address 0x4 - core index']
  #allocation1 [shape = 'u32[144,128]{1,0:T(1,128)}', space=vmem, size = 0x12000, scoped, tag = 'internal scratch']
  %s0 = inlined_call_operand.hbm [shape: f32[2,3], index: 0, kind: input, shape index: {}]
  %s1 = inlined_call_operand.hbm [shape: f32[4,5], index: 1, kind: input, shape index: {}]
  %s2 = inlined_call_operand.hbm [shape: f32[2,5], index: 2, kind: output, shape index: {}]
  %s3 = sld [smem:[#allocation0]]
  $region26: #{linear_forward.1} parent=0
    _
  %s5 = ssub.s32 1, %s3
  %s6 = scalar_select 0, %s5, %s3
  $region1: #{linear_forward.1} parent=0
    #allocation2 [shape = 'u8[1024]{0}', space=vmem, size = 0x400, scoped, tag = 'input window, operand 0, single buffered']
    #allocation3 [shape = 's32[1]{0}', space=sflag, size = 0x4, scoped, tag = 'scoped memory for linear_forward.1']
    #allocation4 [shape = 's32[1]{0}', space=sflag, size = 0x4, scoped, tag = 'scoped memory for linear_forward.1']
    #allocation5 [shape = 'u8[2048]{0}', space=vmem, size = 0x800, scoped, tag = 'input window, operand 1, single buffered']
    #allocation6 [shape = 's32[1]{0}', space=sflag, size = 0x4, scoped, tag = 'scoped memory for linear_forward.1']
    #allocation7 [shape = 'u8[1024]{0}', space=vmem, size = 0x400, scoped, tag = 'output window, operand 0, single buffered']
    %7 = vsyncpa [#allocation3], 0
    %8 = vsyncpa [#allocation6], 0
    %9 = vsyncpa [#allocation4], 0
    // Predicated region
    $region2: #{linear_forward.1} parent=1 // pred_check
      _
    $region3: #{linear_forward.1} parent=1 // pred_check_branch
      %11 = sbr.rel (0) target = $region5
    $region4: #{linear_forward.1} parent=1 // pred_region
      %s13 = ssub.s32 32, 32
      %14 = vsyncadd [#allocation3], %s13
      %s16 = sshll.u32 [#allocation2], 4
      %s17 = int_to_ptr.vmem [resolvable:$true] %s16
      %19 = dma.hbm_to_vmem [thread:$0]  %s0, 32, %s17, [#allocation3]
    $region5: #{linear_forward.1} parent=1 // pred_fallthru
      _
    // Predicated region
    $region6: #{linear_forward.1} parent=1 // pred_check
      _
    $region7: #{linear_forward.1} parent=1 // pred_check_branch
      %21 = sbr.rel (0) target = $region9
    $region8: #{linear_forward.1} parent=1 // pred_region
      %s23 = ssub.s32 64, 64
      %24 = vsyncadd [#allocation6], %s23
      %s26 = sshll.u32 [#allocation5], 4
      %s27 = int_to_ptr.vmem [resolvable:$true] %s26
      %29 = dma.hbm_to_vmem [thread:$0]  %s1, 64, %s27, [#allocation6]
    $region9: #{linear_forward.1} parent=1 // pred_fallthru
      _
    // Predicated region
    $region10: #{linear_forward.1} parent=1 // pred_check
      _
    $region11: #{linear_forward.1} parent=1 // pred_check_branch
      %31 = sbr.rel (0) target = $region13
    $region12: #{linear_forward.1} parent=1 // pred_region
      %32 = dma.done [#allocation3], 32
    $region13: #{linear_forward.1} parent=1 // pred_fallthru
      _
    // Predicated region
    $region14: #{linear_forward.1} parent=1 // pred_check
      _
    $region15: #{linear_forward.1} parent=1 // pred_check_branch
      %34 = sbr.rel (0) target = $region17
    $region16: #{linear_forward.1} parent=1 // pred_region
      %35 = dma.done [#allocation6], 64
    $region17: #{linear_forward.1} parent=1 // pred_fallthru
      _
    %v36 = vld [vmem:[#allocation2] sm:$0x3]
    %v37 = vld [vmem:[#allocation5] sm:$0x7]
    %v38 = vld [vmem:[#allocation5 + $0x3] sm:$0x1]
    %40 = vset.pattern.permute.xlu0 0
    %41 = vperm.xlu0 %40, %v36
    %v42 = vpop.permute.xlu0 %41
    %v44 = vlaneseq
    %v45 = vshrl.u32 %v44, 7
    %v46 = vsub.s32 0, %v45
    %v47 = vrot.slane %v37, %v46
    %v48 = vmul.f32 %v42, %v47
    %v49 = vlaneseq
    %v50 = vshrl.u32 %v49, 7
    %v51 = vsub.s32 0, %v50
    %v52 = vrot.slane %v38, %v51
    %v53 = vadd.f32 %v52, %v48
    %54 = vset.pattern.permute.xlu0 1
    %55 = vperm.xlu0 %54, %v36
    %v56 = vpop.permute.xlu0 %55
    %v58 = vlaneseq
    %v59 = vshrl.u32 %v58, 7
    %v60 = vsub.s32 1, %v59
    %v61 = vrot.slane %v37, %v60
    %v62 = vmul.f32 %v56, %v61
    %v63 = vadd.f32 %v53, %v62
    %64 = vset.pattern.permute.xlu0 2
    %65 = vperm.xlu0 %64, %v36
    %v66 = vpop.permute.xlu0 %65
    %v68 = vlaneseq
    %v69 = vshrl.u32 %v68, 7
    %v70 = vsub.s32 2, %v69
    %v71 = vrot.slane %v37, %v70
    %v72 = vmul.f32 %v66, %v71
    %v73 = vadd.f32 %v63, %v72
    %vm74 = vcmask 33792
    %75 = vst.msk [vmem:[#allocation7] sm:$0x3] %vm74, %v73
    // Predicated region
    $region18: #{linear_forward.1} parent=1 // pred_check
      _
    $region19: #{linear_forward.1} parent=1 // pred_check_branch
      %77 = sbr.rel (0) target = $region21
    $region20: #{linear_forward.1} parent=1 // pred_region
      %s79 = ssub.s32 32, 32
      %80 = vsyncadd [#allocation4], %s79
      %s82 = sshll.u32 [#allocation7], 4
      %s83 = int_to_ptr.vmem [resolvable:$true] %s82
      %85 = dma.vmem_to_hbm [thread:$0]  %s83, 32, %s2, [#allocation4]
    $region21: #{linear_forward.1} parent=1 // pred_fallthru
      _
    // Predicated region
    $region22: #{linear_forward.1} parent=1 // pred_check
      _
    $region23: #{linear_forward.1} parent=1 // pred_check_branch
      %87 = sbr.rel (0) target = $region25
    $region24: #{linear_forward.1} parent=1 // pred_region
      %88 = dma.done [#allocation4], 32
    $region25: #{linear_forward.1} parent=1 // pred_fallthru
      _
    %89 = vsyncpa [#allocation3], 1
    %90 = vsyncpa [#allocation6], 1
    %91 = vsyncpa [#allocation4], 1

</llo_original>
